<compile_context>
chip_gen: v7x
topology: tpu7x:2x2x1
jax: 0.10.0
libtpu: 0.0.40
codegen_flags: <defaults>
</compile_context>

<pallas_src>
import functools

import jax
import jax.numpy as jnp
from jax import lax
from jax.experimental import pallas as pl
from jax.experimental.pallas import tpu as pltpu

_LANE = 128
_SUB = 8
_TM_MAX = 8192      # rows per block -> 4 MiB f32 per input block
_CHUNK = 1024       # rows per in-kernel compute chunk (bounds VMEM temporaries)
_NCORES_MAX = 2     # at most a 2-way megacore split (v7x)


def _num_tensorcores() -> int:
    """Best-effort TensorCore count (for the leading 'parallel' grid axis).

    Returns 1 when it cannot be determined -- always correct, just skips the
    v7x megacore split."""
    try:
        info = pltpu.get_tpu_info()
        for name in ("num_cores", "core_count", "tensorcore_count",
                     "num_tensorcores", "cores_per_chip"):
            v = getattr(info, name, None)
            if isinstance(v, int) and v > 0:
                return max(1, min(_NCORES_MAX, v))
    except Exception:
        pass
    try:
        v = getattr(jax.devices()[0], "num_cores", None)
        if isinstance(v, int) and v > 0:
            return max(1, min(_NCORES_MAX, v))
    except Exception:
        pass
    return 1


def _mse_sumsq_kernel(*refs, nl, tm, steps, rows, two_axis, has_tail, has_dup):
    """Accumulate per-loss sum((pred - target)^2) into a (nl, 8, 128) VMEM
    accumulator; do the single cross-lane reduction on the last step."""
    pred_refs = refs[:nl]
    t_ref = refs[nl]
    out_ref = refs[nl + 1]     # (1, nl) SMEM block (one row per core)
    acc_ref = refs[nl + 2]     # (nl, 8, 128) VMEM accumulator

    if two_axis:
        c = pl.program_id(0)   # core slice
        i = pl.program_id(1)   # step within this core's row range
        tile = c * steps + i   # logical (unclamped) tile index
    else:
        i = pl.program_id(0)
        tile = i
    row_start = tile * tm

    @pl.when(i == 0)
    def _init():
        acc_ref[...] = jnp.zeros_like(acc_ref)

    def _accum(masked):
        # Process the resident (tm, 128) block in static row-chunks so VMEM
        # temporaries stay chunk-sized (<= _CHUNK*128*4 bytes) even for big tm.
        for off in range(0, tm, _CHUNK):
            sz = min(_CHUNK, tm - off)              # static, multiple of 8
            t = t_ref[off:off + sz, :]              # targets read once / chunk
            if masked:
                # Mask rows beyond the logical end of the array (partial
                # boundary block: the un-DMA'd tail of the buffer is garbage;
                # the select stops it from entering the sum).
                ridx = lax.broadcasted_iota(jnp.int32, (sz, _LANE), 0)
                valid = (ridx + (row_start + off)) < rows
            for j in range(nl):
                d = pred_refs[j][off:off + sz, :] - t
                dsq = d * d
                if masked:
                    dsq = jnp.where(valid, dsq, 0.0)
                # Fold sublane-groups: (sz,128) -> (sz//8, 8, 128) -> (8,128).
                acc_ref[j] += dsq.reshape(sz // _SUB, _SUB, _LANE).sum(axis=0)

    if has_tail:
        # The last logical tile is partial; other tiles (and possibly a
        # clamped duplicate) are handled here too.
        is_full = (row_start + tm) <= rows

        @pl.when(is_full)
        def _full():
            _accum(False)

        @pl.when(jnp.logical_not(is_full) & (row_start < rows))
        def _partial():
            _accum(True)
    elif has_dup:
        # Only possible waste is a fully out-of-range clamped duplicate block
        # (odd n_tiles with the 2-core split): skip it entirely.
        @pl.when(row_start < rows)
        def _valid():
            _accum(False)
    else:
        _accum(False)

    @pl.when(i == steps - 1)
    def _finalize():
        for j in range(nl):
            out_ref[0, j] = jnp.sum(acc_ref[j])


def _flatten_f32(x):
    x = x.reshape(-1)
    return x if x.dtype == jnp.float32 else x.astype(jnp.float32)


def _mse_means_pallas(preds, target, *, tm_max=_TM_MAX, ncores=None):
    """Per-loss mean((pred - target)^2) for each pred, in one kernel launch."""
    nl = len(preds)
    n_elems = target.size
    assert n_elems > 0
    for p in preds:
        assert p.shape == target.shape, (p.shape, target.shape)

    flat_t = _flatten_f32(target)
    flat_p = [_flatten_f32(p) for p in preds]

    size = flat_t.shape[0]
    aligned = size - size % (_SUB * _LANE)
    rows = aligned // _LANE               # multiple of 8

    # < 1024-element unaligned tail: plain jnp.  Avoids materializing a padded
    # copy of every full array through HBM (the common NeRF (N,3) case).
    tail = None
    if aligned < size:
        t_tail = flat_t[aligned:]
        tail = jnp.stack([jnp.sum((fp[aligned:] - t_tail) ** 2) for fp in flat_p])

    if rows == 0:
        sums = tail
    else:
        if aligned < size:
            t2 = flat_t[:aligned].reshape(rows, _LANE)
            p2 = [fp[:aligned].reshape(rows, _LANE) for fp in flat_p]
        else:
            t2 = flat_t.reshape(rows, _LANE)
            p2 = [fp.reshape(rows, _LANE) for fp in flat_p]

        tm = rows if rows <= tm_max else tm_max      # multiple of 8 either way
        n_tiles = pl.cdiv(rows, tm)

        if ncores is None:
            ncores = _num_tensorcores()
        ncores = max(1, min(ncores, n_tiles))
        two_axis = ncores > 1

        if two_axis:
            steps = pl.cdiv(n_tiles, ncores)
            grid = (ncores, steps)
            # Clamp so the auto-DMA never targets a fully out-of-bounds block;
            # clamping to the previous tile also lets Pallas skip the re-fetch.
            in_map = lambda c, i: (jnp.minimum(c * steps + i, n_tiles - 1), 0)
            out_map = lambda c, i: (c, 0)
            dims = ("parallel", "arbitrary")
        else:
            steps = n_tiles
            grid = (steps,)
            in_map = lambda i: (i, 0)
            out_map = lambda i: (0, 0)
            dims = ("arbitrary",)

        has_tail = (rows % tm) != 0
        has_dup = two_axis and (ncores * steps > n_tiles)

        kernel = functools.partial(
            _mse_sumsq_kernel, nl=nl, tm=tm, steps=steps, rows=rows,
            two_axis=two_axis, has_tail=has_tail, has_dup=has_dup)

        block_bytes = tm * _LANE * 4
        vmem_limit = min(48 * 1024 * 1024,
                         max(16 * 1024 * 1024,
                             (nl + 1) * 2 * block_bytes + (8 << 20)))

        cost = pl.CostEstimate(
            flops=3 * nl * aligned,
            transcendentals=0,
            bytes_accessed=(nl + 1) * aligned * 4 + ncores * nl * 4)

        out = pl.pallas_call(
            kernel,
            out_shape=jax.ShapeDtypeStruct((ncores, nl), jnp.float32),
            grid_spec=pltpu.PrefetchScalarGridSpec(
                num_scalar_prefetch=0,
                grid=grid,
                in_specs=[pl.BlockSpec((tm, _LANE), in_map)] * (nl + 1),
                out_specs=pl.BlockSpec((1, nl), out_map,
                                       memory_space=pltpu.SMEM),
                scratch_shapes=[pltpu.VMEM((nl, _SUB, _LANE), jnp.float32)],
            ),
            compiler_params=pltpu.CompilerParams(
                dimension_semantics=dims,
                vmem_limit_bytes=vmem_limit,
            ),
            cost_estimate=cost,
        )(*p2, t2)

        sums = jnp.sum(out, axis=0)           # reduce per-core partial sums
        if tail is not None:
            sums = sums + tail

    return sums / jnp.float32(n_elems)        # per-loss means


def mse_loss_forward(inputs: dict, targets: jax.Array) -> jax.Array:
    """Mirrors MSELoss.forward: loss on rgb_coarse (+ rgb_fine if present)."""
    preds = [inputs["rgb_coarse"]]
    if "rgb_fine" in inputs:
        preds.append(inputs["rgb_fine"])
    means = _mse_means_pallas(tuple(preds), targets)
    return jnp.sum(means)


if __name__ == "__main__":
    key = jax.random.PRNGKey(0)
    k1, k2, k3, k4, k5, k6 = jax.random.split(key, 6)

    # --- Case 1: lane-aligned size (1024 rays -> 3072 elems), coarse+fine ---
    n1 = 1024
    rgb_coarse = jax.random.uniform(k1, (n1, 3), dtype=jnp.float32)
    rgb_fine = jax.random.uniform(k2, (n1, 3), dtype=jnp.float32)
    targets = jax.random.uniform(k3, (n1, 3), dtype=jnp.float32)

    loss = jax.block_until_ready(
        mse_loss_forward({"rgb_coarse": rgb_coarse, "rgb_fine": rgb_fine},
                         targets))
    ref = jnp.mean((rgb_coarse - targets) ** 2) + jnp.mean((rgb_fine - targets) ** 2)
    assert jnp.allclose(loss, ref, rtol=1e-5, atol=1e-6), (loss, ref)

    # --- Case 2: coarse-only path -------------------------------------------
    loss_c = jax.block_until_ready(
        mse_loss_forward({"rgb_coarse": rgb_coarse}, targets))
    ref_c = jnp.mean((rgb_coarse - targets) ** 2)
    assert jnp.allclose(loss_c, ref_c, rtol=1e-5, atol=1e-6), (loss_c, ref_c)

    # --- Case 3: unaligned size (600 rays): aligned prefix + jnp tail --------
    n2 = 600
    c2 = jax.random.uniform(k4, (n2, 3), dtype=jnp.float32)
    f2 = jax.random.uniform(k5, (n2, 3), dtype=jnp.float32)
    t2 = jax.random.uniform(k6, (n2, 3), dtype=jnp.float32)
    loss2 = jax.block_until_ready(
        mse_loss_forward({"rgb_coarse": c2, "rgb_fine": f2}, t2))
    ref2 = jnp.mean((c2 - t2) ** 2) + jnp.mean((f2 - t2) ** 2)
    assert jnp.allclose(loss2, ref2, rtol=1e-5, atol=1e-6), (loss2, ref2)

    # --- Case 4: coverage of multi-tile / masked-tail / 2-core-split paths ---
    ref_means = jnp.stack([jnp.mean((rgb_coarse - targets) ** 2),
                           jnp.mean((rgb_fine - targets) ** 2)])
    for tm_max, nc in ((16, 2), (8, 2), (8, 1)):
        means = jax.block_until_ready(
            _mse_means_pallas((rgb_coarse, rgb_fine), targets,
                              tm_max=tm_max, ncores=nc))
        assert jnp.allclose(means, ref_means, rtol=1e-5, atol=1e-6), (
            tm_max, nc, means, ref_means)

    print("KERNEL_OK")
</pallas_src>

<mosaic_0001>
module attributes {stable_mosaic.version = 11 : i64} {
  func.func @_mse_sumsq_kernel(%arg0: i32, %arg1: memref<24x128xf32, #tpu.memory_space<vmem>>, %arg2: memref<24x128xf32, #tpu.memory_space<vmem>>, %arg3: memref<24x128xf32, #tpu.memory_space<vmem>>, %arg4: memref<1x2xf32, #tpu.memory_space<smem>>, %arg5: memref<2x8x128xf32, #tpu.memory_space<vmem>>) attributes {dimension_semantics = [#tpu.dimension_semantics<arbitrary>], iteration_bounds = array<i64: 1>, scalar_prefetch = 0 : i64, scratch_operands = 1 : i64, tpu.core_type = #tpu.core_type<tc>, window_params = [{transform_indices = @transform_0, window_bounds = array<i64: 24, 128>}, {transform_indices = @transform_1, window_bounds = array<i64: 24, 128>}, {transform_indices = @transform_2, window_bounds = array<i64: 24, 128>}, {transform_indices = @transform_3, window_bounds = array<i64: 1, 2>}]} {
    %c0_i32 = arith.constant 0 : i32
    %0 = arith.cmpi eq, %arg0, %c0_i32 : i32
    %1 = arith.extui %0 : i1 to i32
    %c0_i32_0 = arith.constant 0 : i32
    %2 = arith.cmpi ne, %1, %c0_i32_0 : i32
    scf.if %2 {
      %cst_20 = arith.constant 0.000000e+00 : f32
      %29 = vector.broadcast %cst_20 : f32 to vector<2x8x128xf32>
      %c0_21 = arith.constant 0 : index
      %c0_22 = arith.constant 0 : index
      %c0_23 = arith.constant 0 : index
      %30 = vector.load %arg5[%c0_21, %c0_22, %c0_23] : memref<2x8x128xf32, #tpu.memory_space<vmem>>, vector<2x8x128xf32>
      tpu.vector_store %arg5[%c0_21, %c0_22, %c0_23], %29 {strides = array<i32>} : memref<2x8x128xf32, #tpu.memory_space<vmem>>, vector<2x8x128xf32>,
    } else {
    }
    %c0 = arith.constant 0 : index
    %c0_1 = arith.constant 0 : index
    %3 = vector.load %arg3[%c0, %c0_1] : memref<24x128xf32, #tpu.memory_space<vmem>>, vector<24x128xf32>
    %c0_2 = arith.constant 0 : index
    %c0_3 = arith.constant 0 : index
    %4 = vector.load %arg1[%c0_2, %c0_3] : memref<24x128xf32, #tpu.memory_space<vmem>>, vector<24x128xf32>
    %5 = arith.subf %4, %3 : vector<24x128xf32>
    %6 = arith.mulf %5, %5 : vector<24x128xf32>
    %c0_4 = arith.constant 0 : index
    %c0_5 = arith.constant 0 : index
    %c0_6 = arith.constant 0 : index
    %7 = vector.load %arg5[%c0_4, %c0_5, %c0_6] : memref<2x8x128xf32, #tpu.memory_space<vmem>>, vector<1x8x128xf32>
    %8 = vector.shape_cast %7 : vector<1x8x128xf32> to vector<8x128xf32>
    %9 = vector.shape_cast %6 : vector<24x128xf32> to vector<3x8x128xf32>
    %cst = arith.constant dense<0.000000e+00> : vector<8x128xf32>
    %10 = vector.multi_reduction <add>, %9, %cst [0] : vector<3x8x128xf32> to vector<8x128xf32>
    %11 = arith.addf %8, %10 : vector<8x128xf32>
    %c0_7 = arith.constant 0 : index
    %c0_8 = arith.constant 0 : index
    %c0_9 = arith.constant 0 : index
    %12 = vector.load %arg5[%c0_7, %c0_8, %c0_9] : memref<2x8x128xf32, #tpu.memory_space<vmem>>, vector<1x8x128xf32>
    %13 = vector.shape_cast %12 : vector<1x8x128xf32> to vector<8x128xf32>
    %14 = vector.shape_cast %11 : vector<8x128xf32> to vector<1x8x128xf32>
    tpu.vector_store %arg5[%c0_7, %c0_8, %c0_9], %14 {strides = array<i32>} : memref<2x8x128xf32, #tpu.memory_space<vmem>>, vector<1x8x128xf32>,
    %c0_10 = arith.constant 0 : index
    %c0_11 = arith.constant 0 : index
    %15 = vector.load %arg2[%c0_10, %c0_11] : memref<24x128xf32, #tpu.memory_space<vmem>>, vector<24x128xf32>
    %16 = arith.subf %15, %3 : vector<24x128xf32>
    %17 = arith.mulf %16, %16 : vector<24x128xf32>
    %c1 = arith.constant 1 : index
    %c0_12 = arith.constant 0 : index
    %c0_13 = arith.constant 0 : index
    %18 = vector.load %arg5[%c1, %c0_12, %c0_13] : memref<2x8x128xf32, #tpu.memory_space<vmem>>, vector<1x8x128xf32>
    %19 = vector.shape_cast %18 : vector<1x8x128xf32> to vector<8x128xf32>
    %20 = vector.shape_cast %17 : vector<24x128xf32> to vector<3x8x128xf32>
    %cst_14 = arith.constant dense<0.000000e+00> : vector<8x128xf32>
    %21 = vector.multi_reduction <add>, %20, %cst_14 [0] : vector<3x8x128xf32> to vector<8x128xf32>
    %22 = arith.addf %19, %21 : vector<8x128xf32>
    %c1_15 = arith.constant 1 : index
    %c0_16 = arith.constant 0 : index
    %c0_17 = arith.constant 0 : index
    %23 = vector.load %arg5[%c1_15, %c0_16, %c0_17] : memref<2x8x128xf32, #tpu.memory_space<vmem>>, vector<1x8x128xf32>
    %24 = vector.shape_cast %23 : vector<1x8x128xf32> to vector<8x128xf32>
    %25 = vector.shape_cast %22 : vector<8x128xf32> to vector<1x8x128xf32>
    tpu.vector_store %arg5[%c1_15, %c0_16, %c0_17], %25 {strides = array<i32>} : memref<2x8x128xf32, #tpu.memory_space<vmem>>, vector<1x8x128xf32>,
    %c0_i32_18 = arith.constant 0 : i32
    %26 = arith.cmpi eq, %arg0, %c0_i32_18 : i32
    %27 = arith.extui %26 : i1 to i32
    %c0_i32_19 = arith.constant 0 : i32
    %28 = arith.cmpi ne, %27, %c0_i32_19 : i32
    scf.if %28 {
      %c0_20 = arith.constant 0 : index
      %c0_21 = arith.constant 0 : index
      %c0_22 = arith.constant 0 : index
      %29 = vector.load %arg5[%c0_20, %c0_21, %c0_22] : memref<2x8x128xf32, #tpu.memory_space<vmem>>, vector<1x8x128xf32>
      %30 = vector.shape_cast %29 : vector<1x8x128xf32> to vector<8x128xf32>
      %31 = vector.shape_cast %30 : vector<8x128xf32> to vector<1x8x128xf32>
      %cst_23 = arith.constant dense<0.000000e+00> : vector<1xf32>
      %32 = vector.multi_reduction <add>, %31, %cst_23 [1, 2] : vector<1x8x128xf32> to vector<1xf32>
      %33 = vector.shape_cast %32 : vector<1xf32> to vector<1x1x1xf32>
      %34 = vector.extract %33[0, 0, 0] : f32 from vector<1x1x1xf32>
      %c0_24 = arith.constant 0 : index
      %c0_25 = arith.constant 0 : index
      %35 = memref.load %arg4[%c0_24, %c0_25] : memref<1x2xf32, #tpu.memory_space<smem>>
      memref.store %34, %arg4[%c0_24, %c0_25] : memref<1x2xf32, #tpu.memory_space<smem>>
      %c1_26 = arith.constant 1 : index
      %c0_27 = arith.constant 0 : index
      %c0_28 = arith.constant 0 : index
      %36 = vector.load %arg5[%c1_26, %c0_27, %c0_28] : memref<2x8x128xf32, #tpu.memory_space<vmem>>, vector<1x8x128xf32>
      %37 = vector.shape_cast %36 : vector<1x8x128xf32> to vector<8x128xf32>
      %38 = vector.shape_cast %37 : vector<8x128xf32> to vector<1x8x128xf32>
      %cst_29 = arith.constant dense<0.000000e+00> : vector<1xf32>
      %39 = vector.multi_reduction <add>, %38, %cst_29 [1, 2] : vector<1x8x128xf32> to vector<1xf32>
      %40 = vector.shape_cast %39 : vector<1xf32> to vector<1x1x1xf32>
      %41 = vector.extract %40[0, 0, 0] : f32 from vector<1x1x1xf32>
      %c0_30 = arith.constant 0 : index
      %c1_31 = arith.constant 1 : index
      %42 = memref.load %arg4[%c0_30, %c1_31] : memref<1x2xf32, #tpu.memory_space<smem>>
      memref.store %41, %arg4[%c0_30, %c1_31] : memref<1x2xf32, #tpu.memory_space<smem>>
    } else {
    }
    return
  }
  func.func @transform_0(%arg0: i32) -> (i32, i32) {
    %c0_i32 = arith.constant 0 : i32
    %c0_i32_0 = arith.constant 0 : i32
    return %arg0, %c0_i32 : i32, i32
  }
  func.func @transform_1(%arg0: i32) -> (i32, i32) {
    %c0_i32 = arith.constant 0 : i32
    %c0_i32_0 = arith.constant 0 : i32
    return %arg0, %c0_i32 : i32, i32
  }
  func.func @transform_2(%arg0: i32) -> (i32, i32) {
    %c0_i32 = arith.constant 0 : i32
    %c0_i32_0 = arith.constant 0 : i32
    return %arg0, %c0_i32 : i32, i32
  }
  func.func @transform_3(%arg0: i32) -> (i32, i32) {
    %c0_i32 = arith.constant 0 : i32
    %c0_i32_0 = arith.constant 0 : i32
    %c0_i32_1 = arith.constant 0 : i32
    return %c0_i32, %c0_i32_0 : i32, i32
  }
}

</mosaic_0001>

<llo_original>
// kernel: tpu_custom_call.1
$region0: #{tpu_custom_call.1}
  #allocation0 [shape = 'u32[]', space=smem, size = 0x4, offset = 0x4, fixed_abs, tag = 'smem constant byte address 0x4 - core index']
  #allocation1 [shape = 'u32[144,128]{1,0:T(1,128)}', space=vmem, size = 0x12000, scoped, tag = 'internal scratch']
  #allocation2 [shape = 'f32[2,8,128]{2,1,0:T(8,128)}', space=vmem, size = 0x2000, scoped, tag = 'scratch operand']
  %s0 = inlined_call_operand.hbm [shape: f32[24,128], index: 0, kind: input, shape index: {}]
  %s1 = inlined_call_operand.hbm [shape: f32[24,128], index: 1, kind: input, shape index: {}]
  %s2 = inlined_call_operand.hbm [shape: f32[24,128], index: 2, kind: input, shape index: {}]
  %s3 = inlined_call_operand.hbm [shape: f32[1,2], index: 3, kind: output, shape index: {}]
  %s4 = sld [smem:[#allocation0]]
  $region42: #{tpu_custom_call.1} parent=0
    _
  %s6 = ssub.s32 1, %s4
  %s7 = scalar_select 0, %s6, %s4
  $region1: #{tpu_custom_call.1} parent=0
    #allocation3 [shape = 'u8[12288]{0}', space=vmem, size = 0x3000, scoped, tag = 'input window, operand 0, single buffered']
    #allocation4 [shape = 's32[1]{0}', space=sflag, size = 0x4, scoped, tag = 'scoped memory for tpu_custom_call.1']
    #allocation5 [shape = 's32[1]{0}', space=sflag, size = 0x4, scoped, tag = 'scoped memory for tpu_custom_call.1']
    #allocation6 [shape = 'u8[12288]{0}', space=vmem, size = 0x3000, scoped, tag = 'input window, operand 1, single buffered']
    #allocation7 [shape = 's32[1]{0}', space=sflag, size = 0x4, scoped, tag = 'scoped memory for tpu_custom_call.1']
    #allocation8 [shape = 'u8[12288]{0}', space=vmem, size = 0x3000, scoped, tag = 'input window, operand 2, single buffered']
    #allocation9 [shape = 'u8[512]{0}', space=smem, size = 0x200, scoped, tag = 'output window, operand 0, single buffered']
    %8 = vsyncpa [#allocation4], 0
    %9 = vsyncpa [#allocation7], 0
    %10 = vsyncpa [#allocation5], 0
    // Predicated region
    $region2: #{tpu_custom_call.1} parent=1 // pred_check
      _
    $region3: #{tpu_custom_call.1} parent=1 // pred_check_branch
      %12 = sbr.rel (0) target = $region5
    $region4: #{tpu_custom_call.1} parent=1 // pred_region
      %s14 = ssub.s32 384, 384
      %15 = vsyncadd [#allocation4], %s14
      %s16 = sshll.u32 [#allocation3], 4
      %s17 = int_to_ptr.vmem [resolvable:$true] %s16
      %22 = dma.hbm_to_vmem [thread:$0]  %s0, 384, %s17, [#allocation4], 128, 128, 8
    $region5: #{tpu_custom_call.1} parent=1 // pred_fallthru
      _
    // Predicated region
    $region6: #{tpu_custom_call.1} parent=1 // pred_check
      _
    $region7: #{tpu_custom_call.1} parent=1 // pred_check_branch
      %24 = sbr.rel (0) target = $region9
    $region8: #{tpu_custom_call.1} parent=1 // pred_region
      %s26 = ssub.s32 384, 384
      %27 = vsyncadd [#allocation7], %s26
      %s28 = sshll.u32 [#allocation6], 4
      %s29 = int_to_ptr.vmem [resolvable:$true] %s28
      %34 = dma.hbm_to_vmem [thread:$0]  %s1, 384, %s29, [#allocation7], 128, 128, 8
    $region9: #{tpu_custom_call.1} parent=1 // pred_fallthru
      _
    // Predicated region
    $region10: #{tpu_custom_call.1} parent=1 // pred_check
      _
    $region11: #{tpu_custom_call.1} parent=1 // pred_check_branch
      %36 = sbr.rel (0) target = $region13
    $region12: #{tpu_custom_call.1} parent=1 // pred_region
      %s38 = ssub.s32 384, 384
      %39 = vsyncadd [#allocation7], %s38
      %s40 = sshll.u32 [#allocation8], 4
      %s41 = int_to_ptr.vmem [resolvable:$true] %s40
      %46 = dma.hbm_to_vmem [thread:$0]  %s2, 384, %s41, [#allocation7], 128, 128, 8
    $region13: #{tpu_custom_call.1} parent=1 // pred_fallthru
      _
    // Predicated region
    $region14: #{tpu_custom_call.1} parent=1 // pred_check
      _
    $region15: #{tpu_custom_call.1} parent=1 // pred_check_branch
      %48 = sbr.rel (0) target = $region17
    $region16: #{tpu_custom_call.1} parent=1 // pred_region
      %49 = dma.done [#allocation4], 384
    $region17: #{tpu_custom_call.1} parent=1 // pred_fallthru
      _
    // Predicated region
    $region18: #{tpu_custom_call.1} parent=1 // pred_check
      _
    $region19: #{tpu_custom_call.1} parent=1 // pred_check_branch
      %51 = sbr.rel (0) target = $region21
    $region20: #{tpu_custom_call.1} parent=1 // pred_region
      %52 = dma.done [#allocation7], 384
    $region21: #{tpu_custom_call.1} parent=1 // pred_fallthru
      _
    // Predicated region
    $region22: #{tpu_custom_call.1} parent=1 // pred_check
      _
    $region23: #{tpu_custom_call.1} parent=1 // pred_check_branch
      %54 = sbr.rel (0) target = $region25
    $region24: #{tpu_custom_call.1} parent=1 // pred_region
      %55 = dma.done [#allocation7], 384
    $region25: #{tpu_custom_call.1} parent=1 // pred_fallthru
      _
    %p56 = scmp.eq.s32.totalorder 0, 0
    // Predicated region
    $region26: #{tpu_custom_call.1} parent=1 // pred_check
      %p57 = pneg %p56
    $region27: #{tpu_custom_call.1} parent=1 // pred_check_branch
      %59 = sbr.rel (%p57) target = $region29
    $region28: #{tpu_custom_call.1} parent=1 // pred_region
      %60 = vst [vmem:[#allocation2] sm:$0xff] 0.0
      %61 = vst [vmem:[#allocation2 + $0x8] sm:$0xff] 0.0
    $region29: #{tpu_custom_call.1} parent=1 // pred_fallthru
      _
    %v62 = vld [vmem:[#allocation8] sm:$0xff]
    %v63 = vld [vmem:[#allocation8 + $0x8] sm:$0xff]
    %v64 = vld [vmem:[#allocation8 + $0x10] sm:$0xff]
    %v65 = vld [vmem:[#allocation3] sm:$0xff]
    %v66 = vld [vmem:[#allocation3 + $0x8] sm:$0xff]
    %v67 = vld [vmem:[#allocation3 + $0x10] sm:$0xff]
    %v68 = vsub.f32 %v65, %v62
    %v69 = vsub.f32 %v66, %v63
    %v70 = vsub.f32 %v67, %v64
    %v71 = vmul.f32 %v68, %v68
    %v72 = vmul.f32 %v69, %v69
    %v73 = vmul.f32 %v70, %v70
    %v74 = vld [vmem:[#allocation2] sm:$0xff]
    %v75 = vadd.f32 %v71, %v72
    %v76 = vadd.f32 %v75, %v73
    %v77 = vadd.f32 %v74, %v76
    %78 = vst [vmem:[#allocation2] sm:$0xff] %v77
    %v79 = vld [vmem:[#allocation6] sm:$0xff]
    %v80 = vld [vmem:[#allocation6 + $0x8] sm:$0xff]
    %v81 = vld [vmem:[#allocation6 + $0x10] sm:$0xff]
    %v82 = vsub.f32 %v79, %v62
    %v83 = vsub.f32 %v80, %v63
    %v84 = vsub.f32 %v81, %v64
    %v85 = vmul.f32 %v82, %v82
    %v86 = vmul.f32 %v83, %v83
    %v87 = vmul.f32 %v84, %v84
    %s88 = scalar_lea.vmem [#allocation2], 8
    %v89 = vld [vmem:[%s88] sm:$0xff]
    %v90 = vadd.f32 %v85, %v86
    %v91 = vadd.f32 %v90, %v87
    %v92 = vadd.f32 %v89, %v91
    %93 = vst [vmem:[%s88] sm:$0xff] %v92
    // Predicated region
    $region30: #{tpu_custom_call.1} parent=1 // pred_check
      %p94 = pneg %p56
    $region31: #{tpu_custom_call.1} parent=1 // pred_check_branch
      %96 = sbr.rel (%p94) target = $region33
    $region32: #{tpu_custom_call.1} parent=1 // pred_region
      %v97 = vld [vmem:[#allocation2] sm:$0xff]
      %98 = vadd.xlane.f32.xlu0 %v97
      %v99 = vpop.xlane.xlu0 %98
      %v100 = vrot.slane %v99, 4
      %v101 = vadd.f32 %v99, %v100
      %v102 = vrot.slane %v101, 2
      %v103 = vadd.f32 %v101, %v102
      %v104 = vrot.slane %v103, 1
      %v105 = vadd.f32 %v103, %v104
      %s106 = vtos %v105
      %s107 = scalar_lea.smem [#allocation9], 0
      %108 = sst [smem:[%s107]] %s106
      %v109 = vld [vmem:[%s88] sm:$0xff]
      %110 = vadd.xlane.f32.xlu0 %v109
      %v111 = vpop.xlane.xlu0 %110
      %v112 = vrot.slane %v111, 4
      %v113 = vadd.f32 %v111, %v112
      %v114 = vrot.slane %v113, 2
      %v115 = vadd.f32 %v113, %v114
      %v116 = vrot.slane %v115, 1
      %v117 = vadd.f32 %v115, %v116
      %s118 = vtos %v117
      %s119 = scalar_lea.smem [#allocation9], 1
      %120 = sst [smem:[%s119]] %s118
    $region33: #{tpu_custom_call.1} parent=1 // pred_fallthru
      _
    // Predicated region
    $region34: #{tpu_custom_call.1} parent=1 // pred_check
      _
    $region35: #{tpu_custom_call.1} parent=1 // pred_check_branch
      %122 = sbr.rel (0) target = $region37
    $region36: #{tpu_custom_call.1} parent=1 // pred_region
      %s124 = ssub.s32 16, 16
      %125 = vsyncadd [#allocation5], %s124
      %128 = dma.smem_to_hbm [#allocation9], 16, %s3, [#allocation5]
    $region37: #{tpu_custom_call.1} parent=1 // pred_fallthru
      _
    // Predicated region
    $region38: #{tpu_custom_call.1} parent=1 // pred_check
      _
    $region39: #{tpu_custom_call.1} parent=1 // pred_check_branch
      %130 = sbr.rel (0) target = $region41
    $region40: #{tpu_custom_call.1} parent=1 // pred_region
      %131 = dma.done [#allocation5], 16
    $region41: #{tpu_custom_call.1} parent=1 // pred_fallthru
      _
    %132 = sfence
    %133 = vsyncpa [#allocation4], 1
    %134 = vsyncpa [#allocation7], 1
    %135 = vsyncpa [#allocation5], 1

</llo_original>
